<compile_context>
chip_gen: v5e
topology: v5e:2x2
jax: 0.10.0
libtpu: 0.0.40
codegen_flags: <defaults>
</compile_context>

<pallas_src>
import jax
import jax.numpy as jnp
from jax.experimental import pallas as pl
from jax.experimental.pallas import tpu as pltpu

_LANE_CANDIDATES = (1024, 512, 256, 128)   # lane-dense last dims (multiples of 128)
_MAX_BLOCK_BYTES = 8 * 1024 * 1024         # ~8 MiB per block
_TARGET_GRID_STEPS = 4                     # keep both v7x TCs (and DMA paths) busy
_SMALL_FALLBACK_ELEMS = 16 * 1024          # below this, plain XLA wins
_VMEM_LIMIT_BYTES = 48 << 20               # < 64 MiB physical on v7x, plenty on v5e/v6e


def _round_up(x, m):
    return ((x + m - 1) // m) * m


def _pick_lanes(n):
    """Largest lane-dense width (multiple of 128) that divides n, else None."""
    for lanes in _LANE_CANDIDATES:
        if n % lanes == 0:
            return lanes
    return None


def _sigmoid_kernel(x_ref, o_ref):
    x = x_ref[...]
    if x.dtype != jnp.float32:
        # Upcast in vregs only (VMEM block stays in the input dtype); exp +
        # reciprocal land on the EUP slot, VALU stays nearly free.
        x = x.astype(jnp.float32)
    o_ref[...] = jax.nn.sigmoid(x).astype(o_ref.dtype)


def _sigmoid_2d(x2d):
    """Elementwise sigmoid of a lane-dense (rows, lanes) slab via Pallas."""
    rows, lanes = x2d.shape
    itemsize = jnp.dtype(x2d.dtype).itemsize
    # Packed-sublane tile rule: 8 (32-bit), 16 (16-bit), 32 (8-bit).
    sublane = max(8, 32 // itemsize)

    max_block_rows = max(sublane, (_MAX_BLOCK_BYTES // (lanes * itemsize)) // sublane * sublane)

    if rows <= sublane:
        # Single full-array block (exempt from the (8,128) divisibility rule).
        block_rows = rows
    else:
        # Target >= _TARGET_GRID_STEPS grid steps so v7x's two TCs both work,
        # capped at ~8 MiB per block.
        block_rows = min(max_block_rows,
                         _round_up(pl.cdiv(rows, _TARGET_GRID_STEPS), sublane))
        block_rows = max(block_rows, sublane)
        block_rows = min(block_rows, rows)

    grid = (pl.cdiv(rows, block_rows),)   # ragged last block is masked by Pallas

    return pl.pallas_call(
        _sigmoid_kernel,
        out_shape=jax.ShapeDtypeStruct((rows, lanes), x2d.dtype),
        grid=grid,
        in_specs=[pl.BlockSpec((block_rows, lanes), lambda i: (i, 0))],
        out_specs=pl.BlockSpec((block_rows, lanes), lambda i: (i, 0)),
        compiler_params=pltpu.CompilerParams(
            dimension_semantics=("parallel",),
            vmem_limit_bytes=_VMEM_LIMIT_BYTES),
    )(x2d)


def lx_forward(x):
    """Sigmoid over an arbitrary-shape tensor (forward of the `Lx` module)."""
    total = x.size
    if total == 0 or total < _SMALL_FALLBACK_ELEMS:
        # Fast path: pallas_call launch overhead dominates for tiny inputs.
        return jax.nn.sigmoid(x)

    lanes = _pick_lanes(total)
    if lanes is not None:
        # Free reshape (contiguous collapse) to a lane-dense slab: no padding,
        # no extra HBM passes — the kernel is the only traffic.
        return _sigmoid_2d(x.reshape(-1, lanes)).reshape(x.shape)

    # Rare irregular totals (not a multiple of 128): kernel on the
    # 128-divisible prefix, plain sigmoid on the (<128-element) tail.
    flat = x.reshape(-1)
    main = (total // 128) * 128
    lanes = _pick_lanes(main)
    head = _sigmoid_2d(flat[:main].reshape(-1, lanes)).reshape(-1)
    tail = jax.nn.sigmoid(flat[main:])
    return jnp.concatenate([head, tail]).reshape(x.shape)


if __name__ == "__main__":
    key = jax.random.PRNGKey(0)

    # Primary small NCHW input consistent with the module's elementwise forward.
    x = jax.random.normal(key, (2, 4, 16, 16), dtype=jnp.float32)
    y = lx_forward(x)
    jax.block_until_ready(y)
    assert y.shape == x.shape and y.dtype == x.dtype
    assert jnp.allclose(y, jax.nn.sigmoid(x), atol=1e-6, rtol=1e-6)

    # Larger input that exercises the Pallas kernel path (incl. a ragged last
    # row-block: 120 rows of 1024 lanes, block_rows=32 -> 4 grid steps).
    x_big = jax.random.normal(jax.random.PRNGKey(1), (3, 5, 64, 128), dtype=jnp.float32)
    y_big = lx_forward(x_big)
    jax.block_until_ready(y_big)
    assert jnp.allclose(y_big, jax.nn.sigmoid(x_big), atol=1e-6, rtol=1e-6)

    # Irregular total (not a multiple of 128): prefix kernel + tail fallback.
    x_odd = jax.random.normal(jax.random.PRNGKey(2), (5, 7, 33, 31), dtype=jnp.float32)
    y_odd = lx_forward(x_odd)
    jax.block_until_ready(y_odd)
    assert jnp.allclose(y_odd, jax.nn.sigmoid(x_odd), atol=1e-6, rtol=1e-6)

    print("KERNEL_OK")
</pallas_src>

<mosaic_0001>
module attributes {stable_mosaic.version = 11 : i64} {
  func.func @_sigmoid_kernel(%arg0: i32, %arg1: memref<32x1024xf32, #tpu.memory_space<vmem>>, %arg2: memref<32x1024xf32, #tpu.memory_space<vmem>>) attributes {dimension_semantics = [#tpu.dimension_semantics<parallel>], iteration_bounds = array<i64: 4>, scalar_prefetch = 0 : i64, scratch_operands = 0 : i64, tpu.core_type = #tpu.core_type<tc>, window_params = [{transform_indices = @transform_0, window_bounds = array<i64: 32, 1024>}, {transform_indices = @transform_1, window_bounds = array<i64: 32, 1024>}]} {
    %c0 = arith.constant 0 : index
    %c0_0 = arith.constant 0 : index
    %0 = vector.load %arg1[%c0, %c0_0] : memref<32x1024xf32, #tpu.memory_space<vmem>>, vector<32x1024xf32>
    %1 = arith.negf %0 : vector<32x1024xf32>
    %2 = math.exp %1 : vector<32x1024xf32>
    %cst = arith.constant 1.000000e+00 : f32
    %3 = vector.broadcast %cst : f32 to vector<32x1024xf32>
    %4 = arith.addf %3, %2 : vector<32x1024xf32>
    %5 = arith.divf %3, %4 : vector<32x1024xf32>
    %c0_1 = arith.constant 0 : index
    %c0_2 = arith.constant 0 : index
    %6 = vector.load %arg2[%c0_1, %c0_2] : memref<32x1024xf32, #tpu.memory_space<vmem>>, vector<32x1024xf32>
    tpu.vector_store %arg2[%c0_1, %c0_2], %5 {strides = array<i32>} : memref<32x1024xf32, #tpu.memory_space<vmem>>, vector<32x1024xf32>,
    return
  }
  func.func @transform_0(%arg0: i32) -> (i32, i32) {
    %c0_i32 = arith.constant 0 : i32
    %c0_i32_0 = arith.constant 0 : i32
    return %arg0, %c0_i32 : i32, i32
  }
  func.func @transform_1(%arg0: i32) -> (i32, i32) {
    %c0_i32 = arith.constant 0 : i32
    %c0_i32_0 = arith.constant 0 : i32
    return %arg0, %c0_i32 : i32, i32
  }
}

</mosaic_0001>

<llo_original>
// kernel: tpu_custom_call.1
$region0: #{tpu_custom_call.1}
  #allocation0 [shape = 'u32[]', space=smem, size = 0x4, offset = 0x4, fixed_abs, tag = 'smem constant byte address 0x4 - core index']
  #allocation1 [shape = 'u32[72,128]{1,0:T(1,128)}', space=vmem, size = 0x9000, scoped, tag = 'internal scratch']
  %s0 = inlined_call_operand.hbm [shape: f32[120,1024], index: 0, kind: input, shape index: {}]
  %s1 = inlined_call_operand.hbm [shape: f32[120,1024], index: 1, kind: output, shape index: {}]
  %s2 = sld [smem:[#allocation0]]
  $region41: #{tpu_custom_call.1} parent=0
    _
  %s4 = ssub.s32 1, %s2
  %s5 = scalar_select 0, %s4, %s2
  $region1: #{tpu_custom_call.1} parent=0
    #allocation2 [shape = 'u8[262144]{0}', space=vmem, size = 0x40000, scoped, tag = 'input window, operand 0']
    #allocation3 [shape = 's32[2]{0}', space=sflag, size = 0x8, scoped, tag = 'scoped memory for tpu_custom_call.1']
    #allocation4 [shape = 's32[2]{0}', space=sflag, size = 0x8, scoped, tag = 'scoped memory for tpu_custom_call.1']
    #allocation5 [shape = 'u8[262144]{0}', space=vmem, size = 0x40000, scoped, tag = 'output window, operand 0']
    %6 = vsyncpa [#allocation3], 0
    %s7 = scalar_lea.sflag [#allocation3], 1
    %8 = vsyncpa %s7, 0
    %9 = vsyncpa [#allocation4], 0
    %s10 = scalar_lea.sflag [#allocation4], 1
    %11 = vsyncpa %s10, 0
    loop: start=0, step=1, limit=6
    $region2: #{tpu_custom_call.1} parent=1 // loop_pre_header
      _
    $region3: #{tpu_custom_call.1} parent=1 // loop_header
      %s13 = sphi 0, %s17
      %p14 = scmp.ge.s32.totalorder %s13, 6
      %s23 = sphi 0, %s25
      %s26 = sphi 0, %s23
      %s27 = sphi 0, %s26
      %s43 = sphi 0, %s27
      %s49 = sphi 0, %s51
      %s52 = sphi 0, %s49
      %s53 = sphi 0, %s52
      %s69 = sphi 0, %s53
    $region4: #{tpu_custom_call.1} parent=1 // loop_header_branch
      %16 = sbr.rel (%p14) target = $region8
    $region5: #{tpu_custom_call.1} parent=1 // loop_body
      %s18 = ssub.s32 %s13, 1
      %s19 = ssub.s32 %s13, 2
      %s20 = sadd.s32 %s13, 1
      %s21 = ssub.s32 %s13, %s20
      %p22 = scmp.eq.s32.totalorder %s21, 0
      %s24 = sadd.s32 %s23, 1
      %s25 = scalar_select %p22, %s23, %s24
      %p28 = pneg %p22
      %p29 = scmp.eq.s32.totalorder %s13, 3
      %p30 = por %p28, %p29
      %p31 = scmp.ne.s32.totalorder %s23, %s26
      %p32 = scmp.eq.s32.totalorder %s13, 0
      %p33 = por %p31, %p32
      %p34 = scmp.ne.s32.totalorder %s23, %s26
      %p35 = scmp.eq.s32.totalorder %s18, 3
      %p36 = por %p34, %p35
      %p37 = scmp.ne.s32.totalorder %s26, %s27
      %p38 = scmp.eq.s32.totalorder %s18, 0
      %p39 = por %p37, %p38
      %p40 = scmp.ne.s32.totalorder %s26, %s27
      %p41 = scmp.eq.s32.totalorder %s19, 3
      %p42 = por %p40, %p41
      %p44 = scmp.ne.s32.totalorder %s27, %s43
      %p45 = scmp.eq.s32.totalorder %s19, 0
      %p46 = por %p44, %p45
      %s47 = ssub.s32 %s13, %s20
      %p48 = scmp.eq.s32.totalorder %s47, 0
      %s50 = sadd.s32 %s49, 1
      %s51 = scalar_select %p48, %s49, %s50
      %p54 = pneg %p48
      %p55 = scmp.eq.s32.totalorder %s13, 3
      %p56 = por %p54, %p55
      %p57 = scmp.ne.s32.totalorder %s49, %s52
      %p58 = scmp.eq.s32.totalorder %s13, 0
      %p59 = por %p57, %p58
      %p60 = scmp.ne.s32.totalorder %s49, %s52
      %p61 = scmp.eq.s32.totalorder %s18, 3
      %p62 = por %p60, %p61
      %p63 = scmp.ne.s32.totalorder %s52, %s53
      %p64 = scmp.eq.s32.totalorder %s18, 0
      %p65 = por %p63, %p64
      %p66 = scmp.ne.s32.totalorder %s52, %s53
      %p67 = scmp.eq.s32.totalorder %s19, 3
      %p68 = por %p66, %p67
      %p70 = scmp.ne.s32.totalorder %s53, %s69
      %p71 = scmp.eq.s32.totalorder %s19, 0
      %p72 = por %p70, %p71
      %p73 = scmp.le.s32.totalorder 1, %s13
      %p74 = scmp.lt.s32.totalorder %s13, 5
      %p75 = pnand %p73, %p74
      %p76 = pneg %p75
      // Predicated region
      $region9: #{tpu_custom_call.1} parent=5 // pred_check
        _
      $region10: #{tpu_custom_call.1} parent=5 // pred_check_branch
        %78 = sbr.rel (%p75) target = $region12
      $region11: #{tpu_custom_call.1} parent=5 // pred_region
        %s79 = ssub.s32 %s13, 1
      $region12: #{tpu_custom_call.1} parent=5 // pred_fallthru
        _
      %p80 = scmp.lt.s32.totalorder %s13, 4
      // Predicated region
      $region13: #{tpu_custom_call.1} parent=5 // pred_check
        %p81 = pneg %p80
      $region14: #{tpu_custom_call.1} parent=5 // pred_check_branch
        %83 = sbr.rel (%p81) target = $region16
      $region15: #{tpu_custom_call.1} parent=5 // pred_region
        // Predicated region
        $region17: #{tpu_custom_call.1} parent=15 // pred_check
          %p84 = pneg %p33
        $region18: #{tpu_custom_call.1} parent=15 // pred_check_branch
          %86 = sbr.rel (%p84) target = $region20
        $region19: #{tpu_custom_call.1} parent=15 // pred_region
          %s87 = sand.u32 %s23, 1
          %s88 = scalar_lea.sflag [#allocation3], %s87
          %s89 = sand.u32 %s23, 1
          %s90 = smul.addr %s89, 256
          %s91 = scalar_lea.vmem [#allocation2], %s90
          %s92 = smul.u32 4, %s13
          %s93 = ssub.s32 15, %s92
          %p94 = scmp.lt.s32.totalorder %s93, 4
          %s95 = scalar_select %p94, %s93, 4
          %s96 = smul.u32 8, %s95
          %s97 = smul.u32 %s96, 8
          %s98 = ssub.s32 256, %s97
          %s99 = sshll.u32 %s98, 4
          %100 = vsyncadd %s88, %s99
          %p101 = scmp.ne.s32.totalorder 0, %s97
          %s102 = smul.addr %s92, 8
          %s103 = smul.addr %s102, 8
          %s104 = scalar_lea.hbm %s0, %s103
          %s105 = smul.u32 64, %s95
          %s106 = sshll.u32 %s104, 4
          %s107 = int_to_ptr.hbm [resolvable:$true] %s106
          %s108 = sshll.u32 %s91, 4
          %s109 = int_to_ptr.vmem [resolvable:$true] %s108
          %s110 = sshll.u32 %s105, 4
          %114 = dma.hbm_to_vmem [thread:$0]  (%p101), %s107, %s110, %s109, %s88, 1024, 1024, 64
        $region20: #{tpu_custom_call.1} parent=15 // pred_fallthru
          _
      $region16: #{tpu_custom_call.1} parent=5 // pred_fallthru
        _
      %p115 = scmp.le.s32.totalorder 1, %s13
      %p116 = scmp.lt.s32.totalorder %s13, 5
      %p117 = pnand %p115, %p116
      %p118 = pneg %p117
      // Predicated region
      $region21: #{tpu_custom_call.1} parent=5 // pred_check
        _
      $region22: #{tpu_custom_call.1} parent=5 // pred_check_branch
        %120 = sbr.rel (%p117) target = $region24
      $region23: #{tpu_custom_call.1} parent=5 // pred_region
        %s121 = ssub.s32 %s13, 1
        %s122 = sand.u32 %s26, 1
        %s123 = scalar_lea.sflag [#allocation3], %s122
        %s124 = sand.u32 %s26, 1
        %s125 = smul.addr %s124, 256
        %s126 = scalar_lea.vmem [#allocation2], %s125
        // Predicated region
        $region25: #{tpu_custom_call.1} parent=23 // pred_check
          %p127 = pneg %p39
        $region26: #{tpu_custom_call.1} parent=23 // pred_check_branch
          %129 = sbr.rel (%p127) target = $region28
        $region27: #{tpu_custom_call.1} parent=23 // pred_region
          %131 = dma.done %s123, 4096
        $region28: #{tpu_custom_call.1} parent=23 // pred_fallthru
          _
        %s132 = sand.u32 %s26, 1
        %s133 = scalar_lea.sflag [#allocation3], %s132
        %s134 = sand.u32 %s26, 1
        %s135 = smul.addr %s134, 256
        %s136 = scalar_lea.vmem [#allocation2], %s135
        %p137 = pneg %p39
        %p138 = pneg %p36
        %p139 = pneg %p65
        %p140 = pneg %p62
        %s141 = sand.u32 %s52, 1
        %s142 = scalar_lea.sflag [#allocation4], %s141
        %s143 = sand.u32 %s52, 1
        %s144 = smul.addr %s143, 256
        %s145 = scalar_lea.vmem [#allocation5], %s144
        %s146 = smul.u32 4, %s18
        %s147 = ssub.s32 15, %s146
        %p148 = scmp.lt.s32.totalorder %s147, 4
        %s149 = scalar_select %p148, %s147, 4
        %s150 = smul.u32 8, %s149
        %s151 = smul.u32 %s150, 8
        %s152 = smul.u32 4, %s18
        %s153 = ssub.s32 15, %s152
        %p154 = scmp.lt.s32.totalorder %s153, 4
        %s155 = scalar_select %p154, %s153, 4
        %s156 = smul.u32 8, %s155
        %s157 = smul.u32 %s156, 8
        %v158 = vld [vmem:[%s126] sm:$0xff]
        %v159 = vld [vmem:[%s126 + $0x8] sm:$0xff]
        %v160 = vld [vmem:[%s126 + $0x10] sm:$0xff]
        %v161 = vld [vmem:[%s126 + $0x18] sm:$0xff]
        %v162 = vld [vmem:[%s126 + $0x20] sm:$0xff]
        %v163 = vld [vmem:[%s126 + $0x28] sm:$0xff]
        %v164 = vld [vmem:[%s126 + $0x30] sm:$0xff]
        %v165 = vld [vmem:[%s126 + $0x38] sm:$0xff]
        %v166 = vld [vmem:[%s126 + $0x40] sm:$0xff]
        %v167 = vld [vmem:[%s126 + $0x48] sm:$0xff]
        %v168 = vld [vmem:[%s126 + $0x50] sm:$0xff]
        %v169 = vld [vmem:[%s126 + $0x58] sm:$0xff]
        %v170 = vld [vmem:[%s126 + $0x60] sm:$0xff]
        %v171 = vld [vmem:[%s126 + $0x68] sm:$0xff]
        %v172 = vld [vmem:[%s126 + $0x70] sm:$0xff]
        %v173 = vld [vmem:[%s126 + $0x78] sm:$0xff]
        %v174 = vld [vmem:[%s126 + $0x80] sm:$0xff]
        %v175 = vld [vmem:[%s126 + $0x88] sm:$0xff]
        %v176 = vld [vmem:[%s126 + $0x90] sm:$0xff]
        %v177 = vld [vmem:[%s126 + $0x98] sm:$0xff]
        %v178 = vld [vmem:[%s126 + $0xa0] sm:$0xff]
        %v179 = vld [vmem:[%s126 + $0xa8] sm:$0xff]
        %v180 = vld [vmem:[%s126 + $0xb0] sm:$0xff]
        %v181 = vld [vmem:[%s126 + $0xb8] sm:$0xff]
        %v182 = vld [vmem:[%s126 + $0xc0] sm:$0xff]
        %v183 = vld [vmem:[%s126 + $0xc8] sm:$0xff]
        %v184 = vld [vmem:[%s126 + $0xd0] sm:$0xff]
        %v185 = vld [vmem:[%s126 + $0xd8] sm:$0xff]
        %v186 = vld [vmem:[%s126 + $0xe0] sm:$0xff]
        %v187 = vld [vmem:[%s126 + $0xe8] sm:$0xff]
        %v188 = vld [vmem:[%s126 + $0xf0] sm:$0xff]
        %v189 = vld [vmem:[%s126 + $0xf8] sm:$0xff]
        %v190 = vxor.u32 %v158, 2147483648
        %v191 = vxor.u32 %v159, 2147483648
        %v192 = vxor.u32 %v160, 2147483648
        %v193 = vxor.u32 %v161, 2147483648
        %v194 = vxor.u32 %v162, 2147483648
        %v195 = vxor.u32 %v163, 2147483648
        %v196 = vxor.u32 %v164, 2147483648
        %v197 = vxor.u32 %v165, 2147483648
        %v198 = vxor.u32 %v166, 2147483648
        %v199 = vxor.u32 %v167, 2147483648
        %v200 = vxor.u32 %v168, 2147483648
        %v201 = vxor.u32 %v169, 2147483648
        %v202 = vxor.u32 %v170, 2147483648
        %v203 = vxor.u32 %v171, 2147483648
        %v204 = vxor.u32 %v172, 2147483648
        %v205 = vxor.u32 %v173, 2147483648
        %v206 = vxor.u32 %v174, 2147483648
        %v207 = vxor.u32 %v175, 2147483648
        %v208 = vxor.u32 %v176, 2147483648
        %v209 = vxor.u32 %v177, 2147483648
        %v210 = vxor.u32 %v178, 2147483648
        %v211 = vxor.u32 %v179, 2147483648
        %v212 = vxor.u32 %v180, 2147483648
        %v213 = vxor.u32 %v181, 2147483648
        %v214 = vxor.u32 %v182, 2147483648
        %v215 = vxor.u32 %v183, 2147483648
        %v216 = vxor.u32 %v184, 2147483648
        %v217 = vxor.u32 %v185, 2147483648
        %v218 = vxor.u32 %v186, 2147483648
        %v219 = vxor.u32 %v187, 2147483648
        %v220 = vxor.u32 %v188, 2147483648
        %v221 = vxor.u32 %v189, 2147483648
        %v222 = vmul.f32 %v190, 1.442695
        %v223 = vpow.pop %v222
        %v224 = vmul.f32 %v191, 1.442695
        %v225 = vpow.pop %v224
        %v226 = vmul.f32 %v192, 1.442695
        %v227 = vpow.pop %v226
        %v228 = vmul.f32 %v193, 1.442695
        %v229 = vpow.pop %v228
        %v230 = vmul.f32 %v194, 1.442695
        %v231 = vpow.pop %v230
        %v232 = vmul.f32 %v195, 1.442695
        %v233 = vpow.pop %v232
        %v234 = vmul.f32 %v196, 1.442695
        %v235 = vpow.pop %v234
        %v236 = vmul.f32 %v197, 1.442695
        %v237 = vpow.pop %v236
        %v238 = vmul.f32 %v198, 1.442695
        %v239 = vpow.pop %v238
        %v240 = vmul.f32 %v199, 1.442695
        %v241 = vpow.pop %v240
        %v242 = vmul.f32 %v200, 1.442695
        %v243 = vpow.pop %v242
        %v244 = vmul.f32 %v201, 1.442695
        %v245 = vpow.pop %v244
        %v246 = vmul.f32 %v202, 1.442695
        %v247 = vpow.pop %v246
        %v248 = vmul.f32 %v203, 1.442695
        %v249 = vpow.pop %v248
        %v250 = vmul.f32 %v204, 1.442695
        %v251 = vpow.pop %v250
        %v252 = vmul.f32 %v205, 1.442695
        %v253 = vpow.pop %v252
        %v254 = vmul.f32 %v206, 1.442695
        %v255 = vpow.pop %v254
        %v256 = vmul.f32 %v207, 1.442695
        %v257 = vpow.pop %v256
        %v258 = vmul.f32 %v208, 1.442695
        %v259 = vpow.pop %v258
        %v260 = vmul.f32 %v209, 1.442695
        %v261 = vpow.pop %v260
        %v262 = vmul.f32 %v210, 1.442695
        %v263 = vpow.pop %v262
        %v264 = vmul.f32 %v211, 1.442695
        %v265 = vpow.pop %v264
        %v266 = vmul.f32 %v212, 1.442695
        %v267 = vpow.pop %v266
        %v268 = vmul.f32 %v213, 1.442695
        %v269 = vpow.pop %v268
        %v270 = vmul.f32 %v214, 1.442695
        %v271 = vpow.pop %v270
        %v272 = vmul.f32 %v215, 1.442695
        %v273 = vpow.pop %v272
        %v274 = vmul.f32 %v216, 1.442695
        %v275 = vpow.pop %v274
        %v276 = vmul.f32 %v217, 1.442695
        %v277 = vpow.pop %v276
        %v278 = vmul.f32 %v218, 1.442695
        %v279 = vpow.pop %v278
        %v280 = vmul.f32 %v219, 1.442695
        %v281 = vpow.pop %v280
        %v282 = vmul.f32 %v220, 1.442695
        %v283 = vpow.pop %v282
        %v284 = vmul.f32 %v221, 1.442695
        %v285 = vpow.pop %v284
        %v286 = vadd.f32 %v223, 1.0
        %v287 = vadd.f32 %v225, 1.0
        %v288 = vadd.f32 %v227, 1.0
        %v289 = vadd.f32 %v229, 1.0
        %v290 = vadd.f32 %v231, 1.0
        %v291 = vadd.f32 %v233, 1.0
        %v292 = vadd.f32 %v235, 1.0
        %v293 = vadd.f32 %v237, 1.0
        %v294 = vadd.f32 %v239, 1.0
        %v295 = vadd.f32 %v241, 1.0
        %v296 = vadd.f32 %v243, 1.0
        %v297 = vadd.f32 %v245, 1.0
        %v298 = vadd.f32 %v247, 1.0
        %v299 = vadd.f32 %v249, 1.0
        %v300 = vadd.f32 %v251, 1.0
        %v301 = vadd.f32 %v253, 1.0
        %v302 = vadd.f32 %v255, 1.0
        %v303 = vadd.f32 %v257, 1.0
        %v304 = vadd.f32 %v259, 1.0
        %v305 = vadd.f32 %v261, 1.0
        %v306 = vadd.f32 %v263, 1.0
        %v307 = vadd.f32 %v265, 1.0
        %v308 = vadd.f32 %v267, 1.0
        %v309 = vadd.f32 %v269, 1.0
        %v310 = vadd.f32 %v271, 1.0
        %v311 = vadd.f32 %v273, 1.0
        %v312 = vadd.f32 %v275, 1.0
        %v313 = vadd.f32 %v277, 1.0
        %v314 = vadd.f32 %v279, 1.0
        %v315 = vadd.f32 %v281, 1.0
        %v316 = vadd.f32 %v283, 1.0
        %v317 = vadd.f32 %v285, 1.0
        %v318 = vrcp.pop %v286
        %v319 = vmul.f32 %v286, %v318
        %v320 = vsub.f32 1.0, %v319
        %v321 = vmul.f32 %v318, %v320
        %v322 = vadd.f32 %v318, %v321
        %vm323 = vweird.f32 %v286
        %vm324 = vweird.f32 %v318
        %vm325 = vmor %vm323, %vm324
        %v326 = vsel %vm325, %v318, %v322
        %v327 = vand.u32 2147483647, %v286
        %vm328 = vcmp.eq.f32.partialorder %v327, 8.507059e+37
        %v329 = vand.u32 %v286, 2147483648
        %v330 = vor.u32 1.1754944e-38, %v329
        %v331 = vsel %vm328, %v330, %v326
        %v332 = vmul.f32 1.0, %v331
        %v333 = vrcp.pop %v287
        %v334 = vmul.f32 %v287, %v333
        %v335 = vsub.f32 1.0, %v334
        %v336 = vmul.f32 %v333, %v335
        %v337 = vadd.f32 %v333, %v336
        %vm338 = vweird.f32 %v287
        %vm339 = vweird.f32 %v333
        %vm340 = vmor %vm338, %vm339
        %v341 = vsel %vm340, %v333, %v337
        %v342 = vand.u32 2147483647, %v287
        %vm343 = vcmp.eq.f32.partialorder %v342, 8.507059e+37
        %v344 = vand.u32 %v287, 2147483648
        %v345 = vor.u32 1.1754944e-38, %v344
        %v346 = vsel %vm343, %v345, %v341
        %v347 = vmul.f32 1.0, %v346
        %v348 = vrcp.pop %v288
        %v349 = vmul.f32 %v288, %v348
        %v350 = vsub.f32 1.0, %v349
        %v351 = vmul.f32 %v348, %v350
        %v352 = vadd.f32 %v348, %v351
        %vm353 = vweird.f32 %v288
        %vm354 = vweird.f32 %v348
        %vm355 = vmor %vm353, %vm354
        %v356 = vsel %vm355, %v348, %v352
        %v357 = vand.u32 2147483647, %v288
        %vm358 = vcmp.eq.f32.partialorder %v357, 8.507059e+37
        %v359 = vand.u32 %v288, 2147483648
        %v360 = vor.u32 1.1754944e-38, %v359
        %v361 = vsel %vm358, %v360, %v356
        %v362 = vmul.f32 1.0, %v361
        %v363 = vrcp.pop %v289
        %v364 = vmul.f32 %v289, %v363
        %v365 = vsub.f32 1.0, %v364
        %v366 = vmul.f32 %v363, %v365
        %v367 = vadd.f32 %v363, %v366
        %vm368 = vweird.f32 %v289
        %vm369 = vweird.f32 %v363
        %vm370 = vmor %vm368, %vm369
        %v371 = vsel %vm370, %v363, %v367
        %v372 = vand.u32 2147483647, %v289
        %vm373 = vcmp.eq.f32.partialorder %v372, 8.507059e+37
        %v374 = vand.u32 %v289, 2147483648
        %v375 = vor.u32 1.1754944e-38, %v374
        %v376 = vsel %vm373, %v375, %v371
        %v377 = vmul.f32 1.0, %v376
        %v378 = vrcp.pop %v290
        %v379 = vmul.f32 %v290, %v378
        %v380 = vsub.f32 1.0, %v379
        %v381 = vmul.f32 %v378, %v380
        %v382 = vadd.f32 %v378, %v381
        %vm383 = vweird.f32 %v290
        %vm384 = vweird.f32 %v378
        %vm385 = vmor %vm383, %vm384
        %v386 = vsel %vm385, %v378, %v382
        %v387 = vand.u32 2147483647, %v290
        %vm388 = vcmp.eq.f32.partialorder %v387, 8.507059e+37
        %v389 = vand.u32 %v290, 2147483648
        %v390 = vor.u32 1.1754944e-38, %v389
        %v391 = vsel %vm388, %v390, %v386
        %v392 = vmul.f32 1.0, %v391
        %v393 = vrcp.pop %v291
        %v394 = vmul.f32 %v291, %v393
        %v395 = vsub.f32 1.0, %v394
        %v396 = vmul.f32 %v393, %v395
        %v397 = vadd.f32 %v393, %v396
        %vm398 = vweird.f32 %v291
        %vm399 = vweird.f32 %v393
        %vm400 = vmor %vm398, %vm399
        %v401 = vsel %vm400, %v393, %v397
        %v402 = vand.u32 2147483647, %v291
        %vm403 = vcmp.eq.f32.partialorder %v402, 8.507059e+37
        %v404 = vand.u32 %v291, 2147483648
        %v405 = vor.u32 1.1754944e-38, %v404
        %v406 = vsel %vm403, %v405, %v401
        %v407 = vmul.f32 1.0, %v406
        %v408 = vrcp.pop %v292
        %v409 = vmul.f32 %v292, %v408
        %v410 = vsub.f32 1.0, %v409
        %v411 = vmul.f32 %v408, %v410
        %v412 = vadd.f32 %v408, %v411
        %vm413 = vweird.f32 %v292
        %vm414 = vweird.f32 %v408
        %vm415 = vmor %vm413, %vm414
        %v416 = vsel %vm415, %v408, %v412
        %v417 = vand.u32 2147483647, %v292
        %vm418 = vcmp.eq.f32.partialorder %v417, 8.507059e+37
        %v419 = vand.u32 %v292, 2147483648
        %v420 = vor.u32 1.1754944e-38, %v419
        %v421 = vsel %vm418, %v420, %v416
        %v422 = vmul.f32 1.0, %v421
        %v423 = vrcp.pop %v293
        %v424 = vmul.f32 %v293, %v423
        %v425 = vsub.f32 1.0, %v424
        %v426 = vmul.f32 %v423, %v425
        %v427 = vadd.f32 %v423, %v426
        %vm428 = vweird.f32 %v293
        %vm429 = vweird.f32 %v423
        %vm430 = vmor %vm428, %vm429
        %v431 = vsel %vm430, %v423, %v427
        %v432 = vand.u32 2147483647, %v293
        %vm433 = vcmp.eq.f32.partialorder %v432, 8.507059e+37
        %v434 = vand.u32 %v293, 2147483648
        %v435 = vor.u32 1.1754944e-38, %v434
        %v436 = vsel %vm433, %v435, %v431
        %v437 = vmul.f32 1.0, %v436
        %v438 = vrcp.pop %v294
        %v439 = vmul.f32 %v294, %v438
        %v440 = vsub.f32 1.0, %v439
        %v441 = vmul.f32 %v438, %v440
        %v442 = vadd.f32 %v438, %v441
        %vm443 = vweird.f32 %v294
        %vm444 = vweird.f32 %v438
        %vm445 = vmor %vm443, %vm444
        %v446 = vsel %vm445, %v438, %v442
        %v447 = vand.u32 2147483647, %v294
        %vm448 = vcmp.eq.f32.partialorder %v447, 8.507059e+37
        %v449 = vand.u32 %v294, 2147483648
        %v450 = vor.u32 1.1754944e-38, %v449
        %v451 = vsel %vm448, %v450, %v446
        %v452 = vmul.f32 1.0, %v451
        %v453 = vrcp.pop %v295
        %v454 = vmul.f32 %v295, %v453
        %v455 = vsub.f32 1.0, %v454
        %v456 = vmul.f32 %v453, %v455
        %v457 = vadd.f32 %v453, %v456
        %vm458 = vweird.f32 %v295
        %vm459 = vweird.f32 %v453
        %vm460 = vmor %vm458, %vm459
        %v461 = vsel %vm460, %v453, %v457
        %v462 = vand.u32 2147483647, %v295
        %vm463 = vcmp.eq.f32.partialorder %v462, 8.507059e+37
        %v464 = vand.u32 %v295, 2147483648
        %v465 = vor.u32 1.1754944e-38, %v464
        %v466 = vsel %vm463, %v465, %v461
        %v467 = vmul.f32 1.0, %v466
        %v468 = vrcp.pop %v296
        %v469 = vmul.f32 %v296, %v468
        %v470 = vsub.f32 1.0, %v469
        %v471 = vmul.f32 %v468, %v470
        %v472 = vadd.f32 %v468, %v471
        %vm473 = vweird.f32 %v296
        %vm474 = vweird.f32 %v468
        %vm475 = vmor %vm473, %vm474
        %v476 = vsel %vm475, %v468, %v472
        %v477 = vand.u32 2147483647, %v296
        %vm478 = vcmp.eq.f32.partialorder %v477, 8.507059e+37
        %v479 = vand.u32 %v296, 2147483648
        %v480 = vor.u32 1.1754944e-38, %v479
        %v481 = vsel %vm478, %v480, %v476
        %v482 = vmul.f32 1.0, %v481
        %v483 = vrcp.pop %v297
        %v484 = vmul.f32 %v297, %v483
        %v485 = vsub.f32 1.0, %v484
        %v486 = vmul.f32 %v483, %v485
        %v487 = vadd.f32 %v483, %v486
        %vm488 = vweird.f32 %v297
        %vm489 = vweird.f32 %v483
        %vm490 = vmor %vm488, %vm489
        %v491 = vsel %vm490, %v483, %v487
        %v492 = vand.u32 2147483647, %v297
        %vm493 = vcmp.eq.f32.partialorder %v492, 8.507059e+37
        %v494 = vand.u32 %v297, 2147483648
        %v495 = vor.u32 1.1754944e-38, %v494
        %v496 = vsel %vm493, %v495, %v491
        %v497 = vmul.f32 1.0, %v496
        %v498 = vrcp.pop %v298
        %v499 = vmul.f32 %v298, %v498
        %v500 = vsub.f32 1.0, %v499
        %v501 = vmul.f32 %v498, %v500
        %v502 = vadd.f32 %v498, %v501
        %vm503 = vweird.f32 %v298
        %vm504 = vweird.f32 %v498
        %vm505 = vmor %vm503, %vm504
        %v506 = vsel %vm505, %v498, %v502
        %v507 = vand.u32 2147483647, %v298
        %vm508 = vcmp.eq.f32.partialorder %v507, 8.507059e+37
        %v509 = vand.u32 %v298, 2147483648
        %v510 = vor.u32 1.1754944e-38, %v509
        %v511 = vsel %vm508, %v510, %v506
        %v512 = vmul.f32 1.0, %v511
        %v513 = vrcp.pop %v299
        %v514 = vmul.f32 %v299, %v513
        %v515 = vsub.f32 1.0, %v514
        %v516 = vmul.f32 %v513, %v515
        %v517 = vadd.f32 %v513, %v516
        %vm518 = vweird.f32 %v299
        %vm519 = vweird.f32 %v513
        %vm520 = vmor %vm518, %vm519
        %v521 = vsel %vm520, %v513, %v517
        %v522 = vand.u32 2147483647, %v299
        %vm523 = vcmp.eq.f32.partialorder %v522, 8.507059e+37
        %v524 = vand.u32 %v299, 2147483648
        %v525 = vor.u32 1.1754944e-38, %v524
        %v526 = vsel %vm523, %v525, %v521
        %v527 = vmul.f32 1.0, %v526
        %v528 = vrcp.pop %v300
        %v529 = vmul.f32 %v300, %v528
        %v530 = vsub.f32 1.0, %v529
        %v531 = vmul.f32 %v528, %v530
        %v532 = vadd.f32 %v528, %v531
        %vm533 = vweird.f32 %v300
        %vm534 = vweird.f32 %v528
        %vm535 = vmor %vm533, %vm534
        %v536 = vsel %vm535, %v528, %v532
        %v537 = vand.u32 2147483647, %v300
        %vm538 = vcmp.eq.f32.partialorder %v537, 8.507059e+37
        %v539 = vand.u32 %v300, 2147483648
        %v540 = vor.u32 1.1754944e-38, %v539
        %v541 = vsel %vm538, %v540, %v536
        %v542 = vmul.f32 1.0, %v541
        %v543 = vrcp.pop %v301
        %v544 = vmul.f32 %v301, %v543
        %v545 = vsub.f32 1.0, %v544
        %v546 = vmul.f32 %v543, %v545
        %v547 = vadd.f32 %v543, %v546
        %vm548 = vweird.f32 %v301
        %vm549 = vweird.f32 %v543
        %vm550 = vmor %vm548, %vm549
        %v551 = vsel %vm550, %v543, %v547
        %v552 = vand.u32 2147483647, %v301
        %vm553 = vcmp.eq.f32.partialorder %v552, 8.507059e+37
        %v554 = vand.u32 %v301, 2147483648
        %v555 = vor.u32 1.1754944e-38, %v554
        %v556 = vsel %vm553, %v555, %v551
        %v557 = vmul.f32 1.0, %v556
        %v558 = vrcp.pop %v302
        %v559 = vmul.f32 %v302, %v558
        %v560 = vsub.f32 1.0, %v559
        %v561 = vmul.f32 %v558, %v560
        %v562 = vadd.f32 %v558, %v561
        %vm563 = vweird.f32 %v302
        %vm564 = vweird.f32 %v558
        %vm565 = vmor %vm563, %vm564
        %v566 = vsel %vm565, %v558, %v562
        %v567 = vand.u32 2147483647, %v302
        %vm568 = vcmp.eq.f32.partialorder %v567, 8.507059e+37
        %v569 = vand.u32 %v302, 2147483648
        %v570 = vor.u32 1.1754944e-38, %v569
        %v571 = vsel %vm568, %v570, %v566
        %v572 = vmul.f32 1.0, %v571
        %v573 = vrcp.pop %v303
        %v574 = vmul.f32 %v303, %v573
        %v575 = vsub.f32 1.0, %v574
        %v576 = vmul.f32 %v573, %v575
        %v577 = vadd.f32 %v573, %v576
        %vm578 = vweird.f32 %v303
        %vm579 = vweird.f32 %v573
        %vm580 = vmor %vm578, %vm579
        %v581 = vsel %vm580, %v573, %v577
        %v582 = vand.u32 2147483647, %v303
        %vm583 = vcmp.eq.f32.partialorder %v582, 8.507059e+37
        %v584 = vand.u32 %v303, 2147483648
        %v585 = vor.u32 1.1754944e-38, %v584
        %v586 = vsel %vm583, %v585, %v581
        %v587 = vmul.f32 1.0, %v586
        %v588 = vrcp.pop %v304
        %v589 = vmul.f32 %v304, %v588
        %v590 = vsub.f32 1.0, %v589
        %v591 = vmul.f32 %v588, %v590
        %v592 = vadd.f32 %v588, %v591
        %vm593 = vweird.f32 %v304
        %vm594 = vweird.f32 %v588
        %vm595 = vmor %vm593, %vm594
        %v596 = vsel %vm595, %v588, %v592
        %v597 = vand.u32 2147483647, %v304
        %vm598 = vcmp.eq.f32.partialorder %v597, 8.507059e+37
        %v599 = vand.u32 %v304, 2147483648
        %v600 = vor.u32 1.1754944e-38, %v599
        %v601 = vsel %vm598, %v600, %v596
        %v602 = vmul.f32 1.0, %v601
        %v603 = vrcp.pop %v305
        %v604 = vmul.f32 %v305, %v603
        %v605 = vsub.f32 1.0, %v604
        %v606 = vmul.f32 %v603, %v605
        %v607 = vadd.f32 %v603, %v606
        %vm608 = vweird.f32 %v305
        %vm609 = vweird.f32 %v603
        %vm610 = vmor %vm608, %vm609
        %v611 = vsel %vm610, %v603, %v607
        %v612 = vand.u32 2147483647, %v305
        %vm613 = vcmp.eq.f32.partialorder %v612, 8.507059e+37
        %v614 = vand.u32 %v305, 2147483648
        %v615 = vor.u32 1.1754944e-38, %v614
        %v616 = vsel %vm613, %v615, %v611
        %v617 = vmul.f32 1.0, %v616
        %v618 = vrcp.pop %v306
        %v619 = vmul.f32 %v306, %v618
        %v620 = vsub.f32 1.0, %v619
        %v621 = vmul.f32 %v618, %v620
        %v622 = vadd.f32 %v618, %v621
        %vm623 = vweird.f32 %v306
        %vm624 = vweird.f32 %v618
        %vm625 = vmor %vm623, %vm624
        %v626 = vsel %vm625, %v618, %v622
        %v627 = vand.u32 2147483647, %v306
        %vm628 = vcmp.eq.f32.partialorder %v627, 8.507059e+37
        %v629 = vand.u32 %v306, 2147483648
        %v630 = vor.u32 1.1754944e-38, %v629
        %v631 = vsel %vm628, %v630, %v626
        %v632 = vmul.f32 1.0, %v631
        %v633 = vrcp.pop %v307
        %v634 = vmul.f32 %v307, %v633
        %v635 = vsub.f32 1.0, %v634
        %v636 = vmul.f32 %v633, %v635
        %v637 = vadd.f32 %v633, %v636
        %vm638 = vweird.f32 %v307
        %vm639 = vweird.f32 %v633
        %vm640 = vmor %vm638, %vm639
        %v641 = vsel %vm640, %v633, %v637
        %v642 = vand.u32 2147483647, %v307
        %vm643 = vcmp.eq.f32.partialorder %v642, 8.507059e+37
        %v644 = vand.u32 %v307, 2147483648
        %v645 = vor.u32 1.1754944e-38, %v644
        %v646 = vsel %vm643, %v645, %v641
        %v647 = vmul.f32 1.0, %v646
        %v648 = vrcp.pop %v308
        %v649 = vmul.f32 %v308, %v648
        %v650 = vsub.f32 1.0, %v649
        %v651 = vmul.f32 %v648, %v650
        %v652 = vadd.f32 %v648, %v651
        %vm653 = vweird.f32 %v308
        %vm654 = vweird.f32 %v648
        %vm655 = vmor %vm653, %vm654
        %v656 = vsel %vm655, %v648, %v652
        %v657 = vand.u32 2147483647, %v308
        %vm658 = vcmp.eq.f32.partialorder %v657, 8.507059e+37
        %v659 = vand.u32 %v308, 2147483648
        %v660 = vor.u32 1.1754944e-38, %v659
        %v661 = vsel %vm658, %v660, %v656
        %v662 = vmul.f32 1.0, %v661
        %v663 = vrcp.pop %v309
        %v664 = vmul.f32 %v309, %v663
        %v665 = vsub.f32 1.0, %v664
        %v666 = vmul.f32 %v663, %v665
        %v667 = vadd.f32 %v663, %v666
        %vm668 = vweird.f32 %v309
        %vm669 = vweird.f32 %v663
        %vm670 = vmor %vm668, %vm669
        %v671 = vsel %vm670, %v663, %v667
        %v672 = vand.u32 2147483647, %v309
        %vm673 = vcmp.eq.f32.partialorder %v672, 8.507059e+37
        %v674 = vand.u32 %v309, 2147483648
        %v675 = vor.u32 1.1754944e-38, %v674
        %v676 = vsel %vm673, %v675, %v671
        %v677 = vmul.f32 1.0, %v676
        %v678 = vrcp.pop %v310
        %v679 = vmul.f32 %v310, %v678
        %v680 = vsub.f32 1.0, %v679
        %v681 = vmul.f32 %v678, %v680
        %v682 = vadd.f32 %v678, %v681
        %vm683 = vweird.f32 %v310
        %vm684 = vweird.f32 %v678
        %vm685 = vmor %vm683, %vm684
        %v686 = vsel %vm685, %v678, %v682
        %v687 = vand.u32 2147483647, %v310
        %vm688 = vcmp.eq.f32.partialorder %v687, 8.507059e+37
        %v689 = vand.u32 %v310, 2147483648
        %v690 = vor.u32 1.1754944e-38, %v689
        %v691 = vsel %vm688, %v690, %v686
        %v692 = vmul.f32 1.0, %v691
        %v693 = vrcp.pop %v311
        %v694 = vmul.f32 %v311, %v693
        %v695 = vsub.f32 1.0, %v694
        %v696 = vmul.f32 %v693, %v695
        %v697 = vadd.f32 %v693, %v696
        %vm698 = vweird.f32 %v311
        %vm699 = vweird.f32 %v693
        %vm700 = vmor %vm698, %vm699
        %v701 = vsel %vm700, %v693, %v697
        %v702 = vand.u32 2147483647, %v311
        %vm703 = vcmp.eq.f32.partialorder %v702, 8.507059e+37
        %v704 = vand.u32 %v311, 2147483648
        %v705 = vor.u32 1.1754944e-38, %v704
        %v706 = vsel %vm703, %v705, %v701
        %v707 = vmul.f32 1.0, %v706
        %v708 = vrcp.pop %v312
        %v709 = vmul.f32 %v312, %v708
        %v710 = vsub.f32 1.0, %v709
        %v711 = vmul.f32 %v708, %v710
        %v712 = vadd.f32 %v708, %v711
        %vm713 = vweird.f32 %v312
        %vm714 = vweird.f32 %v708
        %vm715 = vmor %vm713, %vm714
        %v716 = vsel %vm715, %v708, %v712
        %v717 = vand.u32 2147483647, %v312
        %vm718 = vcmp.eq.f32.partialorder %v717, 8.507059e+37
        %v719 = vand.u32 %v312, 2147483648
        %v720 = vor.u32 1.1754944e-38, %v719
        %v721 = vsel %vm718, %v720, %v716
        %v722 = vmul.f32 1.0, %v721
        %v723 = vrcp.pop %v313
        %v724 = vmul.f32 %v313, %v723
        %v725 = vsub.f32 1.0, %v724
        %v726 = vmul.f32 %v723, %v725
        %v727 = vadd.f32 %v723, %v726
        %vm728 = vweird.f32 %v313
        %vm729 = vweird.f32 %v723
        %vm730 = vmor %vm728, %vm729
        %v731 = vsel %vm730, %v723, %v727
        %v732 = vand.u32 2147483647, %v313
        %vm733 = vcmp.eq.f32.partialorder %v732, 8.507059e+37
        %v734 = vand.u32 %v313, 2147483648
        %v735 = vor.u32 1.1754944e-38, %v734
        %v736 = vsel %vm733, %v735, %v731
        %v737 = vmul.f32 1.0, %v736
        %v738 = vrcp.pop %v314
        %v739 = vmul.f32 %v314, %v738
        %v740 = vsub.f32 1.0, %v739
        %v741 = vmul.f32 %v738, %v740
        %v742 = vadd.f32 %v738, %v741
        %vm743 = vweird.f32 %v314
        %vm744 = vweird.f32 %v738
        %vm745 = vmor %vm743, %vm744
        %v746 = vsel %vm745, %v738, %v742
        %v747 = vand.u32 2147483647, %v314
        %vm748 = vcmp.eq.f32.partialorder %v747, 8.507059e+37
        %v749 = vand.u32 %v314, 2147483648
        %v750 = vor.u32 1.1754944e-38, %v749
        %v751 = vsel %vm748, %v750, %v746
        %v752 = vmul.f32 1.0, %v751
        %v753 = vrcp.pop %v315
        %v754 = vmul.f32 %v315, %v753
        %v755 = vsub.f32 1.0, %v754
        %v756 = vmul.f32 %v753, %v755
        %v757 = vadd.f32 %v753, %v756
        %vm758 = vweird.f32 %v315
        %vm759 = vweird.f32 %v753
        %vm760 = vmor %vm758, %vm759
        %v761 = vsel %vm760, %v753, %v757
        %v762 = vand.u32 2147483647, %v315
        %vm763 = vcmp.eq.f32.partialorder %v762, 8.507059e+37
        %v764 = vand.u32 %v315, 2147483648
        %v765 = vor.u32 1.1754944e-38, %v764
        %v766 = vsel %vm763, %v765, %v761
        %v767 = vmul.f32 1.0, %v766
        %v768 = vrcp.pop %v316
        %v769 = vmul.f32 %v316, %v768
        %v770 = vsub.f32 1.0, %v769
        %v771 = vmul.f32 %v768, %v770
        %v772 = vadd.f32 %v768, %v771
        %vm773 = vweird.f32 %v316
        %vm774 = vweird.f32 %v768
        %vm775 = vmor %vm773, %vm774
        %v776 = vsel %vm775, %v768, %v772
        %v777 = vand.u32 2147483647, %v316
        %vm778 = vcmp.eq.f32.partialorder %v777, 8.507059e+37
        %v779 = vand.u32 %v316, 2147483648
        %v780 = vor.u32 1.1754944e-38, %v779
        %v781 = vsel %vm778, %v780, %v776
        %v782 = vmul.f32 1.0, %v781
        %v783 = vrcp.pop %v317
        %v784 = vmul.f32 %v317, %v783
        %v785 = vsub.f32 1.0, %v784
        %v786 = vmul.f32 %v783, %v785
        %v787 = vadd.f32 %v783, %v786
        %vm788 = vweird.f32 %v317
        %vm789 = vweird.f32 %v783
        %vm790 = vmor %vm788, %vm789
        %v791 = vsel %vm790, %v783, %v787
        %v792 = vand.u32 2147483647, %v317
        %vm793 = vcmp.eq.f32.partialorder %v792, 8.507059e+37
        %v794 = vand.u32 %v317, 2147483648
        %v795 = vor.u32 1.1754944e-38, %v794
        %v796 = vsel %vm793, %v795, %v791
        %v797 = vmul.f32 1.0, %v796
        %798 = vst [vmem:[%s145] sm:$0xff] %v332
        %799 = vst [vmem:[%s145 + $0x8] sm:$0xff] %v347
        %800 = vst [vmem:[%s145 + $0x10] sm:$0xff] %v362
        %801 = vst [vmem:[%s145 + $0x18] sm:$0xff] %v377
        %802 = vst [vmem:[%s145 + $0x20] sm:$0xff] %v392
        %803 = vst [vmem:[%s145 + $0x28] sm:$0xff] %v407
        %804 = vst [vmem:[%s145 + $0x30] sm:$0xff] %v422
        %805 = vst [vmem:[%s145 + $0x38] sm:$0xff] %v437
        %806 = vst [vmem:[%s145 + $0x40] sm:$0xff] %v452
        %807 = vst [vmem:[%s145 + $0x48] sm:$0xff] %v467
        %808 = vst [vmem:[%s145 + $0x50] sm:$0xff] %v482
        %809 = vst [vmem:[%s145 + $0x58] sm:$0xff] %v497
        %810 = vst [vmem:[%s145 + $0x60] sm:$0xff] %v512
        %811 = vst [vmem:[%s145 + $0x68] sm:$0xff] %v527
        %812 = vst [vmem:[%s145 + $0x70] sm:$0xff] %v542
        %813 = vst [vmem:[%s145 + $0x78] sm:$0xff] %v557
        %814 = vst [vmem:[%s145 + $0x80] sm:$0xff] %v572
        %815 = vst [vmem:[%s145 + $0x88] sm:$0xff] %v587
        %816 = vst [vmem:[%s145 + $0x90] sm:$0xff] %v602
        %817 = vst [vmem:[%s145 + $0x98] sm:$0xff] %v617
        %818 = vst [vmem:[%s145 + $0xa0] sm:$0xff] %v632
        %819 = vst [vmem:[%s145 + $0xa8] sm:$0xff] %v647
        %820 = vst [vmem:[%s145 + $0xb0] sm:$0xff] %v662
        %821 = vst [vmem:[%s145 + $0xb8] sm:$0xff] %v677
        %822 = vst [vmem:[%s145 + $0xc0] sm:$0xff] %v692
        %823 = vst [vmem:[%s145 + $0xc8] sm:$0xff] %v707
        %824 = vst [vmem:[%s145 + $0xd0] sm:$0xff] %v722
        %825 = vst [vmem:[%s145 + $0xd8] sm:$0xff] %v737
        %826 = vst [vmem:[%s145 + $0xe0] sm:$0xff] %v752
        %827 = vst [vmem:[%s145 + $0xe8] sm:$0xff] %v767
        %828 = vst [vmem:[%s145 + $0xf0] sm:$0xff] %v782
        %829 = vst [vmem:[%s145 + $0xf8] sm:$0xff] %v797
        %s830 = sand.u32 %s52, 1
        %s831 = scalar_lea.sflag [#allocation4], %s830
        %s832 = sand.u32 %s52, 1
        %s833 = smul.addr %s832, 256
        %s834 = scalar_lea.vmem [#allocation5], %s833
        // Predicated region
        $region29: #{tpu_custom_call.1} parent=23 // pred_check
          %p835 = pneg %p62
        $region30: #{tpu_custom_call.1} parent=23 // pred_check_branch
          %837 = sbr.rel (%p835) target = $region32
        $region31: #{tpu_custom_call.1} parent=23 // pred_region
          %s838 = smul.u32 4, %s18
          %s839 = ssub.s32 15, %s838
          %p840 = scmp.lt.s32.totalorder %s839, 4
          %s841 = scalar_select %p840, %s839, 4
          %s842 = smul.u32 8, %s841
          %s843 = smul.u32 %s842, 8
          %s844 = ssub.s32 256, %s843
          %s845 = sshll.u32 %s844, 4
          %846 = vsyncadd %s831, %s845
          %p847 = scmp.ne.s32.totalorder 0, %s843
          %s848 = smul.addr %s838, 8
          %s849 = smul.addr %s848, 8
          %s850 = scalar_lea.hbm %s1, %s849
          %s851 = smul.u32 64, %s841
          %s852 = sshll.u32 %s834, 4
          %s853 = int_to_ptr.vmem [resolvable:$true] %s852
          %s854 = sshll.u32 %s850, 4
          %s855 = int_to_ptr.hbm [resolvable:$true] %s854
          %s856 = sshll.u32 %s851, 4
          %860 = dma.vmem_to_hbm [thread:$0]  (%p847), %s853, %s856, %s855, %s831, 1024, 1024, 64
        $region32: #{tpu_custom_call.1} parent=23 // pred_fallthru
          _
      $region24: #{tpu_custom_call.1} parent=5 // pred_fallthru
        _
      %p861 = scmp.le.s32.totalorder 2, %s13
      // Predicated region
      $region33: #{tpu_custom_call.1} parent=5 // pred_check
        %p862 = pneg %p861
      $region34: #{tpu_custom_call.1} parent=5 // pred_check_branch
        %864 = sbr.rel (%p862) target = $region36
      $region35: #{tpu_custom_call.1} parent=5 // pred_region
        %s865 = ssub.s32 %s13, 2
        // Predicated region
        $region37: #{tpu_custom_call.1} parent=35 // pred_check
          %p866 = pneg %p68
        $region38: #{tpu_custom_call.1} parent=35 // pred_check_branch
          %868 = sbr.rel (%p866) target = $region40
        $region39: #{tpu_custom_call.1} parent=35 // pred_region
          %s869 = sand.u32 %s53, 1
          %s870 = scalar_lea.sflag [#allocation4], %s869
          %s871 = sand.u32 %s53, 1
          %s872 = smul.addr %s871, 256
          %s873 = scalar_lea.vmem [#allocation5], %s872
          %875 = dma.done %s870, 4096
        $region40: #{tpu_custom_call.1} parent=35 // pred_fallthru
          _
      $region36: #{tpu_custom_call.1} parent=5 // pred_fallthru
        _
    $region6: #{tpu_custom_call.1} parent=1 // loop_footer
      %s17 = sadd.s32 1, %s13
    $region7: #{tpu_custom_call.1} parent=1 // loop_footer_branch
      %12 = sbr.rel target = $region3
    $region8: #{tpu_custom_call.1} parent=1 // loop_exit
      _
    %876 = vsyncpa [#allocation3], 1
    %s877 = scalar_lea.sflag [#allocation3], 1
    %878 = vsyncpa %s877, 1
    %879 = vsyncpa [#allocation4], 1
    %s880 = scalar_lea.sflag [#allocation4], 1
    %881 = vsyncpa %s880, 1

</llo_original>
